<compile_context>
chip_gen: v7x
topology: tpu7x:2x2x1
jax: 0.10.0
libtpu: 0.0.40
codegen_flags: <defaults>
</compile_context>

<pallas_src>
import functools

import jax
import jax.numpy as jnp
from jax.experimental import pallas as pl
from jax.experimental.pallas import tpu as pltpu


def _round_up(x, m):
    return ((x + m - 1) // m) * m


# ---------------------------------------------------------------------------
# Stage 1: fused 1x1 convolutions (+ bias + ReLU) for branches 1, 2 and 3
#          -> one matmul over channels, x read from HBM exactly once.
# ---------------------------------------------------------------------------
def _fused_1x1_relu_kernel(x_ref, w_ref, b_ref, o_ref):
    # x_ref: (tm, Cin)  w_ref: (Cin, Cout)  b_ref: (1, Cout)  o_ref: (tm, Cout)
    acc = jnp.dot(x_ref[...], w_ref[...], preferred_element_type=jnp.float32)
    acc = acc + b_ref[...].astype(jnp.float32)
    o_ref[...] = jnp.maximum(acc, 0.0).astype(o_ref.dtype)


def fused_conv1x1_relu(x_flat, w, b, *, row_tile=512):
    """x_flat: (M, Cin), w: (Cin, Cout), b: (Cout,) -> (M, Cout)."""
    M, Cin = x_flat.shape
    Cout = w.shape[1]
    tm = min(row_tile, _round_up(M, 8))           # multiple of 8, never == M-fallback
    grid = (pl.cdiv(M, tm),)
    b2 = b.reshape(1, Cout)

    isz = jnp.dtype(x_flat.dtype).itemsize
    est = 2 * tm * (Cin + Cout) * isz + (Cin * Cout + Cout) * isz
    vmem_limit = int(min(max(4 * est, 32 * 2**20), 64 * 2**20))

    return pl.pallas_call(
        _fused_1x1_relu_kernel,
        out_shape=jax.ShapeDtypeStruct((M, Cout), x_flat.dtype),
        grid=grid,
        in_specs=[
            pl.BlockSpec((tm, Cin), lambda i: (i, 0)),
            pl.BlockSpec((Cin, Cout), lambda i: (0, 0)),
            pl.BlockSpec((1, Cout), lambda i: (0, 0)),
        ],
        out_specs=pl.BlockSpec((tm, Cout), lambda i: (i, 0)),
        compiler_params=pltpu.CompilerParams(
            dimension_semantics=("parallel",),
            vmem_limit_bytes=vmem_limit),
    )(x_flat, w, b2)


# ---------------------------------------------------------------------------
# Stage 2: single kernel producing the whole Ctot-wide NHWC output slab
#          (p1 copy | 3x3 conv | 5x5 conv | fused maxpool + 1x1 conv).
# ---------------------------------------------------------------------------
def _shifted_patches(xp, K, H, W):
    """xp: (H+K-1, W+K-1, C) padded value.  Returns the K*K shifted (H, W, C)
    patches in (kh outer, kw inner) order, using only K sublane relayouts
    (W shifts); the H shifts are cheap leading-axis slices."""
    cols = [xp[:, kw:kw + W, :] for kw in range(K)]
    return [cols[kw][kh:kh + H] for kh in range(K) for kw in range(K)]


def _inception_tail_kernel(s1_ref, x_ref, w3_ref, b3_ref, w5_ref, b5_ref,
                           w4_ref, b4_ref, o_ref, pad3_ref, pad5_ref,
                           padp_ref, *, H, W, c1, c2r, c3r):
    c2o = w3_ref.shape[-1]
    c3o = w5_ref.shape[-1]
    c4 = w4_ref.shape[-1]

    # ---- branch 1: already computed by stage 1; plain channel copy --------
    o_ref[:, :, 0:c1] = s1_ref[:, :, 0:c1].astype(o_ref.dtype)

    def conv_relu_same(pad_ref, w_col_ref, b_ref, K, interior):
        pad = (K - 1) // 2
        Cin = pad_ref.shape[-1]
        # Zero halo + interior copy -- padding lives only in VMEM, never HBM.
        pad_ref[...] = jnp.zeros(pad_ref.shape, pad_ref.dtype)
        pad_ref[pad:pad + H, pad:pad + W, :] = interior
        patches = _shifted_patches(pad_ref[...], K, H, W)
        # im2col in VMEM: one wide-contraction (K*K*Cin) MXU matmul.
        col = jnp.concatenate(patches, axis=-1).reshape(H * W, K * K * Cin)
        acc = jnp.dot(col, w_col_ref[...], preferred_element_type=jnp.float32)
        acc = acc + b_ref[...].astype(jnp.float32)
        return jnp.maximum(acc, 0.0).reshape(H, W, -1)

    # ---- branch 2: 3x3 conv (pad 1) on stage-1 channels [c1, c1+c2r) ------
    p2 = conv_relu_same(pad3_ref, w3_ref, b3_ref, 3,
                        s1_ref[:, :, c1:c1 + c2r])
    o_ref[:, :, c1:c1 + c2o] = p2.astype(o_ref.dtype)

    # ---- branch 3: 5x5 conv (pad 2) on stage-1 channels [c1+c2r, ...) -----
    p3 = conv_relu_same(pad5_ref, w5_ref, b5_ref, 5,
                        s1_ref[:, :, c1 + c2r:c1 + c2r + c3r])
    o_ref[:, :, c1 + c2o:c1 + c2o + c3o] = p3.astype(o_ref.dtype)

    # ---- branch 4: 3x3/s1/p1 max-pool fused with the 1x1 conv -------------
    padp_ref[...] = jnp.full(padp_ref.shape, -jnp.inf, padp_ref.dtype)
    padp_ref[1:1 + H, 1:1 + W, :] = x_ref[...]
    patches = _shifted_patches(padp_ref[...], 3, H, W)
    pooled = patches[0]
    for p in patches[1:]:
        pooled = jnp.maximum(pooled, p)
    acc = jnp.dot(pooled.reshape(H * W, -1), w4_ref[...],
                  preferred_element_type=jnp.float32)
    acc = acc + b4_ref[...].astype(jnp.float32)
    p4 = jnp.maximum(acc, 0.0).reshape(H, W, c4)
    o_ref[:, :, c1 + c2o + c3o:] = p4.astype(o_ref.dtype)


def inception_tail(s1, x, w3_col, b3, w5_col, b5, w4_mat, b4,
                   *, c1, c2r, c3r, ctot):
    N, H, W, Cs1 = s1.shape
    Cin = x.shape[-1]
    c2o = w3_col.shape[-1]
    c3o = w5_col.shape[-1]
    c4 = w4_mat.shape[-1]
    dt = x.dtype

    kern = functools.partial(_inception_tail_kernel,
                             H=H, W=W, c1=c1, c2r=c2r, c3r=c3r)
    b3_2 = b3.reshape(1, c2o)
    b5_2 = b5.reshape(1, c3o)
    b4_2 = b4.reshape(1, c4)

    isz = jnp.dtype(dt).itemsize
    est = (2 * H * W * (Cs1 + Cin + ctot) * isz
           + (w3_col.size + w5_col.size + w4_mat.size) * 4
           + H * W * (9 * c2r + 25 * c3r) * 4
           + (H + 4) * (W + 4) * (c2r + c3r + Cin) * isz)
    vmem_limit = int(min(max(4 * est, 32 * 2**20), 64 * 2**20))

    # TODO(synk): for large spatial extents, add an H-tile grid axis (with a
    # manually-DMA'd K-1 row halo into the VMEM pad scratch) so per-step VMEM
    # stays well under the v7x 64 MiB budget and the pipeline is deeper when
    # N is small.
    return pl.pallas_call(
        kern,
        out_shape=jax.ShapeDtypeStruct((N, H, W, ctot), dt),
        grid=(N,),
        in_specs=[
            pl.BlockSpec((None, H, W, Cs1), lambda n: (n, 0, 0, 0)),
            pl.BlockSpec((None, H, W, Cin), lambda n: (n, 0, 0, 0)),
            pl.BlockSpec(w3_col.shape, lambda n: (0, 0)),
            pl.BlockSpec((1, c2o), lambda n: (0, 0)),
            pl.BlockSpec(w5_col.shape, lambda n: (0, 0)),
            pl.BlockSpec((1, c3o), lambda n: (0, 0)),
            pl.BlockSpec(w4_mat.shape, lambda n: (0, 0)),
            pl.BlockSpec((1, c4), lambda n: (0, 0)),
        ],
        out_specs=pl.BlockSpec((None, H, W, ctot), lambda n: (n, 0, 0, 0)),
        scratch_shapes=[
            pltpu.VMEM((H + 2, W + 2, c2r), dt),   # 3x3 halo pad
            pltpu.VMEM((H + 4, W + 4, c3r), dt),   # 5x5 halo pad
            pltpu.VMEM((H + 2, W + 2, Cin), dt),   # maxpool halo pad (-inf)
        ],
        compiler_params=pltpu.CompilerParams(
            dimension_semantics=("parallel",),
            vmem_limit_bytes=vmem_limit),
    )(s1, x, w3_col, b3_2, w5_col, b5_2, w4_mat, b4_2)


# ---------------------------------------------------------------------------
# Inception module
# ---------------------------------------------------------------------------
class InceptionPallas:
    """Pallas re-implementation of the PyTorch Inception block's forward."""

    def __init__(self, in_channels, c1, c2, c3, c4, key):
        ks = jax.random.split(key, 12)

        def conv_params(k_w, k_b, kk, cin, cout):
            # PyTorch Conv2d default: U(-1/sqrt(fan_in), 1/sqrt(fan_in))
            fan_in = cin * kk * kk
            bound = 1.0 / float(fan_in) ** 0.5
            w = jax.random.uniform(k_w, (kk, kk, cin, cout), jnp.float32,
                                   -bound, bound)
            b = jax.random.uniform(k_b, (cout,), jnp.float32, -bound, bound)
            return w, b

        self.in_channels = in_channels
        self.c1, self.c2, self.c3, self.c4 = c1, c2, c3, c4

        self.w1, self.b1 = conv_params(ks[0], ks[1], 1, in_channels, c1)
        self.w2_1, self.b2_1 = conv_params(ks[2], ks[3], 1, in_channels, c2[0])
        self.w2_2, self.b2_2 = conv_params(ks[4], ks[5], 3, c2[0], c2[1])
        self.w3_1, self.b3_1 = conv_params(ks[6], ks[7], 1, in_channels, c3[0])
        self.w3_2, self.b3_2 = conv_params(ks[8], ks[9], 5, c3[0], c3[1])
        self.w4, self.b4 = conv_params(ks[10], ks[11], 1, in_channels, c4)

        # Pre-fused / matmul-ready weight layouts.
        # Stage 1: one wide matmul computes [p1 | p2a | p3a] (x read once).
        self.w_s1 = jnp.concatenate(
            [self.w1[0, 0], self.w2_1[0, 0], self.w3_1[0, 0]], axis=1)
        self.b_s1 = jnp.concatenate([self.b1, self.b2_1, self.b3_1])
        # Stage 2: im2col weight layouts (K*K*Cin, Cout); 1x1 as plain matmul.
        self.w3_col = self.w2_2.reshape(3 * 3 * c2[0], c2[1])
        self.w5_col = self.w3_2.reshape(5 * 5 * c3[0], c3[1])
        self.w4_mat = self.w4[0, 0]

    def __call__(self, x_nchw):
        N, C, H, W = x_nchw.shape
        c1 = self.c1
        c2r, c2o = self.c2
        c3r, c3o = self.c3
        c4 = self.c4
        ctot = c1 + c2o + c3o + c4

        x = jnp.transpose(x_nchw, (0, 2, 3, 1))       # NHWC, channels on lanes

        # Stage 1: fused 1x1 convs for branches 1/2/3 (single HBM pass of x).
        s1 = fused_conv1x1_relu(x.reshape(N * H * W, C), self.w_s1, self.b_s1)
        s1 = s1.reshape(N, H, W, c1 + c2r + c3r)

        # Stage 2: one kernel writes the whole (N, H, W, Ctot) slab directly
        # (no jnp.concatenate, no pooled / padded intermediates in HBM).
        out = inception_tail(
            s1, x, self.w3_col, self.b2_2, self.w5_col, self.b3_2,
            self.w4_mat, self.b4, c1=c1, c2r=c2r, c3r=c3r, ctot=ctot)

        return jnp.transpose(out, (0, 3, 1, 2))       # back to NCHW


# ---------------------------------------------------------------------------
# Pure-JAX reference (XLA convolutions) for correctness checking
# ---------------------------------------------------------------------------
def _ref_inception(x_nchw, m):
    def conv(x, w_kkio, b, pad):
        w_oihw = jnp.transpose(w_kkio, (3, 2, 0, 1))
        y = jax.lax.conv_general_dilated(
            x, w_oihw, window_strides=(1, 1),
            padding=((pad, pad), (pad, pad)),
            dimension_numbers=("NCHW", "OIHW", "NCHW"))
        return y + b.reshape(1, -1, 1, 1)

    relu = lambda t: jnp.maximum(t, 0.0)
    p1 = relu(conv(x_nchw, m.w1, m.b1, 0))
    p2 = relu(conv(relu(conv(x_nchw, m.w2_1, m.b2_1, 0)), m.w2_2, m.b2_2, 1))
    p3 = relu(conv(relu(conv(x_nchw, m.w3_1, m.b3_1, 0)), m.w3_2, m.b3_2, 2))
    pool = jax.lax.reduce_window(
        x_nchw, -jnp.inf, jax.lax.max,
        window_dimensions=(1, 1, 3, 3), window_strides=(1, 1, 1, 1),
        padding=((0, 0), (0, 0), (1, 1), (1, 1)))
    p4 = relu(conv(pool, m.w4, m.b4, 0))
    return jnp.concatenate([p1, p2, p3, p4], axis=1)


if __name__ == "__main__":
    key = jax.random.PRNGKey(0)
    kx, kparams = jax.random.split(key)

    N, Cin, H, W = 2, 4, 16, 16
    c1, c2, c3, c4 = 8, (4, 8), (4, 8), 8
    x = jax.random.normal(kx, (N, Cin, H, W), dtype=jnp.float32)

    model = InceptionPallas(Cin, c1, c2, c3, c4, kparams)
    y = jax.block_until_ready(model(x))

    y_ref = jax.block_until_ready(_ref_inception(x, model))
    assert y.shape == (N, c1 + c2[1] + c3[1] + c4, H, W), y.shape
    assert jnp.allclose(y, y_ref, atol=1e-4, rtol=1e-4), float(
        jnp.max(jnp.abs(y - y_ref)))

    print("KERNEL_OK")
</pallas_src>

<mosaic_0001>
module attributes {stable_mosaic.version = 11 : i64} {
  func.func @_fused_1x1_relu_kernel(%arg0: i32, %arg1: memref<512x4xf32, #tpu.memory_space<vmem>>, %arg2: memref<4x16xf32, #tpu.memory_space<vmem>>, %arg3: memref<1x16xf32, #tpu.memory_space<vmem>>, %arg4: memref<512x16xf32, #tpu.memory_space<vmem>>) attributes {dimension_semantics = [#tpu.dimension_semantics<parallel>], iteration_bounds = array<i64: 1>, scalar_prefetch = 0 : i64, scratch_operands = 0 : i64, tpu.core_type = #tpu.core_type<tc>, window_params = [{transform_indices = @transform_0, window_bounds = array<i64: 512, 4>}, {pipeline_mode = #tpu.pipeline_mode<synchronous>, transform_indices = @transform_1, window_bounds = array<i64: 4, 16>}, {pipeline_mode = #tpu.pipeline_mode<synchronous>, transform_indices = @transform_2, window_bounds = array<i64: 1, 16>}, {transform_indices = @transform_3, window_bounds = array<i64: 512, 16>}]} {
    %c0 = arith.constant 0 : index
    %c0_0 = arith.constant 0 : index
    %0 = vector.load %arg1[%c0, %c0_0] : memref<512x4xf32, #tpu.memory_space<vmem>>, vector<512x4xf32>
    %c0_1 = arith.constant 0 : index
    %c0_2 = arith.constant 0 : index
    %1 = vector.load %arg2[%c0_1, %c0_2] : memref<4x16xf32, #tpu.memory_space<vmem>>, vector<4x16xf32>
    %cst = arith.constant dense<0.000000e+00> : vector<512x16xf32>
    %2 = tpu.matmul %0, %1, %cst {dimension_numbers = #tpu.dot_dimension_numbers<[1], [0], [0], [1], [0, 0, 1, 1], [], []>} : vector<512x4xf32>, vector<4x16xf32>, vector<512x16xf32> -> vector<512x16xf32>
    %c0_3 = arith.constant 0 : index
    %c0_4 = arith.constant 0 : index
    %3 = vector.load %arg3[%c0_3, %c0_4] : memref<1x16xf32, #tpu.memory_space<vmem>>, vector<1x16xf32>
    %4 = vector.broadcast %3 : vector<1x16xf32> to vector<512x16xf32>
    %5 = arith.addf %2, %4 : vector<512x16xf32>
    %cst_5 = arith.constant 0.000000e+00 : f32
    %6 = vector.broadcast %cst_5 : f32 to vector<512x16xf32>
    %7 = arith.maximumf %5, %6 : vector<512x16xf32>
    %c0_6 = arith.constant 0 : index
    %c0_7 = arith.constant 0 : index
    %8 = vector.load %arg4[%c0_6, %c0_7] : memref<512x16xf32, #tpu.memory_space<vmem>>, vector<512x16xf32>
    tpu.vector_store %arg4[%c0_6, %c0_7], %7 {strides = array<i32>} : memref<512x16xf32, #tpu.memory_space<vmem>>, vector<512x16xf32>,
    return
  }
  func.func @transform_0(%arg0: i32) -> (i32, i32) {
    %c0_i32 = arith.constant 0 : i32
    %c0_i32_0 = arith.constant 0 : i32
    return %arg0, %c0_i32 : i32, i32
  }
  func.func @transform_1(%arg0: i32) -> (i32, i32) {
    %c0_i32 = arith.constant 0 : i32
    %c0_i32_0 = arith.constant 0 : i32
    %c0_i32_1 = arith.constant 0 : i32
    return %c0_i32, %c0_i32_0 : i32, i32
  }
  func.func @transform_2(%arg0: i32) -> (i32, i32) {
    %c0_i32 = arith.constant 0 : i32
    %c0_i32_0 = arith.constant 0 : i32
    %c0_i32_1 = arith.constant 0 : i32
    return %c0_i32, %c0_i32_0 : i32, i32
  }
  func.func @transform_3(%arg0: i32) -> (i32, i32) {
    %c0_i32 = arith.constant 0 : i32
    %c0_i32_0 = arith.constant 0 : i32
    return %arg0, %c0_i32 : i32, i32
  }
}

</mosaic_0001>

<llo_original>
// kernel: tpu_custom_call.1
$region0: #{tpu_custom_call.1}
  #allocation0 [shape = 'u32[]', space=smem, size = 0x4, offset = 0x4, fixed_abs, tag = 'smem constant byte address 0x4 - core index']
  #allocation1 [shape = 'u32[144,128]{1,0:T(1,128)}', space=vmem, size = 0x12000, scoped, tag = 'internal scratch']
  %s0 = inlined_call_operand.vmem [shape: f32[512,4], index: 0, kind: input, shape index: {}]
  %s1 = inlined_call_operand.vmem [shape: f32[4,16], index: 1, kind: input, shape index: {}]
  %s2 = inlined_call_operand.vmem [shape: f32[1,16], index: 2, kind: input, shape index: {}]
  %s3 = inlined_call_operand.vmem [shape: f32[512,16], index: 3, kind: output, shape index: {}]
  %s4 = sld [smem:[#allocation0]]
  $region22: #{tpu_custom_call.1} parent=0
    _
  %s6 = ssub.s32 1, %s4
  %s7 = scalar_select 0, %s6, %s4
  // Predicated region
  $region2: #{tpu_custom_call.1} parent=0 // pred_check
    _
  $region3: #{tpu_custom_call.1} parent=0 // pred_check_branch
    %9 = sbr.rel (0) target = $region5
  $region4: #{tpu_custom_call.1} parent=0 // pred_region
    _
  $region5: #{tpu_custom_call.1} parent=0 // pred_fallthru
    _
  // Predicated region
  $region6: #{tpu_custom_call.1} parent=0 // pred_check
    _
  $region7: #{tpu_custom_call.1} parent=0 // pred_check_branch
    %11 = sbr.rel (0) target = $region9
  $region8: #{tpu_custom_call.1} parent=0 // pred_region
    _
  $region9: #{tpu_custom_call.1} parent=0 // pred_fallthru
    _
  // Predicated region
  $region10: #{tpu_custom_call.1} parent=0 // pred_check
    _
  $region11: #{tpu_custom_call.1} parent=0 // pred_check_branch
    %13 = sbr.rel (0) target = $region13
  $region12: #{tpu_custom_call.1} parent=0 // pred_region
    _
  $region13: #{tpu_custom_call.1} parent=0 // pred_fallthru
    _
  %v14 = vld [vmem:[%s0] sm:$0xff]
  %v15 = vld [vmem:[%s0 + $0x8] sm:$0xff]
  %v16 = vld [vmem:[%s0 + $0x10] sm:$0xff]
  %v17 = vld [vmem:[%s0 + $0x18] sm:$0xff]
  %v18 = vld [vmem:[%s0 + $0x20] sm:$0xff]
  %v19 = vld [vmem:[%s0 + $0x28] sm:$0xff]
  %v20 = vld [vmem:[%s0 + $0x30] sm:$0xff]
  %v21 = vld [vmem:[%s0 + $0x38] sm:$0xff]
  %v22 = vld [vmem:[%s0 + $0x40] sm:$0xff]
  %v23 = vld [vmem:[%s0 + $0x48] sm:$0xff]
  %v24 = vld [vmem:[%s0 + $0x50] sm:$0xff]
  %v25 = vld [vmem:[%s0 + $0x58] sm:$0xff]
  %v26 = vld [vmem:[%s0 + $0x60] sm:$0xff]
  %v27 = vld [vmem:[%s0 + $0x68] sm:$0xff]
  %v28 = vld [vmem:[%s0 + $0x70] sm:$0xff]
  %v29 = vld [vmem:[%s0 + $0x78] sm:$0xff]
  %v30 = vld [vmem:[%s0 + $0x80] sm:$0xff]
  %v31 = vld [vmem:[%s0 + $0x88] sm:$0xff]
  %v32 = vld [vmem:[%s0 + $0x90] sm:$0xff]
  %v33 = vld [vmem:[%s0 + $0x98] sm:$0xff]
  %v34 = vld [vmem:[%s0 + $0xa0] sm:$0xff]
  %v35 = vld [vmem:[%s0 + $0xa8] sm:$0xff]
  %v36 = vld [vmem:[%s0 + $0xb0] sm:$0xff]
  %v37 = vld [vmem:[%s0 + $0xb8] sm:$0xff]
  %v38 = vld [vmem:[%s0 + $0xc0] sm:$0xff]
  %v39 = vld [vmem:[%s0 + $0xc8] sm:$0xff]
  %v40 = vld [vmem:[%s0 + $0xd0] sm:$0xff]
  %v41 = vld [vmem:[%s0 + $0xd8] sm:$0xff]
  %v42 = vld [vmem:[%s0 + $0xe0] sm:$0xff]
  %v43 = vld [vmem:[%s0 + $0xe8] sm:$0xff]
  %v44 = vld [vmem:[%s0 + $0xf0] sm:$0xff]
  %v45 = vld [vmem:[%s0 + $0xf8] sm:$0xff]
  %v46 = vld [vmem:[%s0 + $0x100] sm:$0xff]
  %v47 = vld [vmem:[%s0 + $0x108] sm:$0xff]
  %v48 = vld [vmem:[%s0 + $0x110] sm:$0xff]
  %v49 = vld [vmem:[%s0 + $0x118] sm:$0xff]
  %v50 = vld [vmem:[%s0 + $0x120] sm:$0xff]
  %v51 = vld [vmem:[%s0 + $0x128] sm:$0xff]
  %v52 = vld [vmem:[%s0 + $0x130] sm:$0xff]
  %v53 = vld [vmem:[%s0 + $0x138] sm:$0xff]
  %v54 = vld [vmem:[%s0 + $0x140] sm:$0xff]
  %v55 = vld [vmem:[%s0 + $0x148] sm:$0xff]
  %v56 = vld [vmem:[%s0 + $0x150] sm:$0xff]
  %v57 = vld [vmem:[%s0 + $0x158] sm:$0xff]
  %v58 = vld [vmem:[%s0 + $0x160] sm:$0xff]
  %v59 = vld [vmem:[%s0 + $0x168] sm:$0xff]
  %v60 = vld [vmem:[%s0 + $0x170] sm:$0xff]
  %v61 = vld [vmem:[%s0 + $0x178] sm:$0xff]
  %v62 = vld [vmem:[%s0 + $0x180] sm:$0xff]
  %v63 = vld [vmem:[%s0 + $0x188] sm:$0xff]
  %v64 = vld [vmem:[%s0 + $0x190] sm:$0xff]
  %v65 = vld [vmem:[%s0 + $0x198] sm:$0xff]
  %v66 = vld [vmem:[%s0 + $0x1a0] sm:$0xff]
  %v67 = vld [vmem:[%s0 + $0x1a8] sm:$0xff]
  %v68 = vld [vmem:[%s0 + $0x1b0] sm:$0xff]
  %v69 = vld [vmem:[%s0 + $0x1b8] sm:$0xff]
  %v70 = vld [vmem:[%s0 + $0x1c0] sm:$0xff]
  %v71 = vld [vmem:[%s0 + $0x1c8] sm:$0xff]
  %v72 = vld [vmem:[%s0 + $0x1d0] sm:$0xff]
  %v73 = vld [vmem:[%s0 + $0x1d8] sm:$0xff]
  %v74 = vld [vmem:[%s0 + $0x1e0] sm:$0xff]
  %v75 = vld [vmem:[%s0 + $0x1e8] sm:$0xff]
  %v76 = vld [vmem:[%s0 + $0x1f0] sm:$0xff]
  %v77 = vld [vmem:[%s0 + $0x1f8] sm:$0xff]
  %v78 = vld [vmem:[%s1] sm:$0xf]
  %v79 = vld [vmem:[%s2] sm:$0x1]
  %v81 = vlaneseq
  %v82 = vshrl.u32 %v81, 7
  %v83 = vsub.s32 0, %v82
  %v84 = vrot.slane %v79, %v83
  %vm86 = vcmask 31744
  %v88 = vsel %vm86, %v14, 0
  %v91 = vsel %vm86, %v15, 0
  %v94 = vsel %vm86, %v16, 0
  %v97 = vsel %vm86, %v17, 0
  %v100 = vsel %vm86, %v18, 0
  %v103 = vsel %vm86, %v19, 0
  %v106 = vsel %vm86, %v20, 0
  %v109 = vsel %vm86, %v21, 0
  %v112 = vsel %vm86, %v22, 0
  %v115 = vsel %vm86, %v23, 0
  %v118 = vsel %vm86, %v24, 0
  %v121 = vsel %vm86, %v25, 0
  %v124 = vsel %vm86, %v26, 0
  %v127 = vsel %vm86, %v27, 0
  %v130 = vsel %vm86, %v28, 0
  %v133 = vsel %vm86, %v29, 0
  %v136 = vsel %vm86, %v30, 0
  %v139 = vsel %vm86, %v31, 0
  %v142 = vsel %vm86, %v32, 0
  %v145 = vsel %vm86, %v33, 0
  %v148 = vsel %vm86, %v34, 0
  %v151 = vsel %vm86, %v35, 0
  %v154 = vsel %vm86, %v36, 0
  %v157 = vsel %vm86, %v37, 0
  %v160 = vsel %vm86, %v38, 0
  %v163 = vsel %vm86, %v39, 0
  %v166 = vsel %vm86, %v40, 0
  %v169 = vsel %vm86, %v41, 0
  %v172 = vsel %vm86, %v42, 0
  %v175 = vsel %vm86, %v43, 0
  %v178 = vsel %vm86, %v44, 0
  %v181 = vsel %vm86, %v45, 0
  %v184 = vsel %vm86, %v46, 0
  %v187 = vsel %vm86, %v47, 0
  %v190 = vsel %vm86, %v48, 0
  %v193 = vsel %vm86, %v49, 0
  %v196 = vsel %vm86, %v50, 0
  %v199 = vsel %vm86, %v51, 0
  %v202 = vsel %vm86, %v52, 0
  %v205 = vsel %vm86, %v53, 0
  %v208 = vsel %vm86, %v54, 0
  %v211 = vsel %vm86, %v55, 0
  %v214 = vsel %vm86, %v56, 0
  %v217 = vsel %vm86, %v57, 0
  %v220 = vsel %vm86, %v58, 0
  %v223 = vsel %vm86, %v59, 0
  %v226 = vsel %vm86, %v60, 0
  %v229 = vsel %vm86, %v61, 0
  %v232 = vsel %vm86, %v62, 0
  %v235 = vsel %vm86, %v63, 0
  %v238 = vsel %vm86, %v64, 0
  %v241 = vsel %vm86, %v65, 0
  %v244 = vsel %vm86, %v66, 0
  %v247 = vsel %vm86, %v67, 0
  %v250 = vsel %vm86, %v68, 0
  %v253 = vsel %vm86, %v69, 0
  %v256 = vsel %vm86, %v70, 0
  %v259 = vsel %vm86, %v71, 0
  %v262 = vsel %vm86, %v72, 0
  %v265 = vsel %vm86, %v73, 0
  %v268 = vsel %vm86, %v74, 0
  %v271 = vsel %vm86, %v75, 0
  %v274 = vsel %vm86, %v76, 0
  %v277 = vsel %vm86, %v77, 0
  %vm279 = vcmask 1043456
  %v281 = vsel %vm279, %v78, 0
  %283 = vmatprep.subr.mxu0 0.0
  %284 = vmatpush1.msra.mxu0 %v281
  %285 = vmatprep.subr.mxu0 0.0
  %286 = vmatpush1.msra.mxu0 0.0
  %287 = vmatprep.subr.mxu0 0.0
  %288 = vmatpush1.msra.mxu0 0.0
  %289 = vmatprep.subr.mxu0 0.0
  %290 = vmatpush1.msra.mxu0 0.0
  %291 = vmatprep.subr.mxu0 0.0
  %292 = vmatpush1.msra.mxu0 0.0
  %293 = vmatprep.subr.mxu0 0.0
  %294 = vmatpush1.msra.mxu0 0.0
  %295 = vmatprep.subr.mxu0 0.0
  %296 = vmatpush1.msra.mxu0 0.0
  %297 = vmatprep.subr.mxu0 0.0
  %298 = vmatpush1.msra.mxu0 0.0
  %299 = vmatprep.subr.mxu0 0.0
  %300 = vmatpush1.msra.mxu0 0.0
  %301 = vmatprep.subr.mxu0 0.0
  %302 = vmatpush1.msra.mxu0 0.0
  %303 = vmatprep.subr.mxu0 0.0
  %304 = vmatpush1.msra.mxu0 0.0
  %305 = vmatprep.subr.mxu0 0.0
  %306 = vmatpush1.msra.mxu0 0.0
  %307 = vmatprep.subr.mxu0 0.0
  %308 = vmatpush1.msra.mxu0 0.0
  %309 = vmatprep.subr.mxu0 0.0
  %310 = vmatpush1.msra.mxu0 0.0
  %311 = vmatprep.subr.mxu0 0.0
  %312 = vmatpush1.msra.mxu0 0.0
  %313 = vmatprep.subr.mxu0 0.0
  %314 = vmatpush1.msra.mxu0 0.0
  %315 = vmatprep.subr.mxu0 0.0
  %316 = vmatpush1.msra.mxu0 0.0
  %317 = vmatprep.subr.mxu0 0.0
  %318 = vmatpush1.msra.mxu0 0.0
  %319 = vmatprep.subr.mxu0 0.0
  %320 = vmatpush1.msra.mxu0 0.0
  %321 = vmatprep.subr.mxu0 0.0
  %322 = vmatpush1.msra.mxu0 0.0
  %323 = vmatprep.subr.mxu0 0.0
  %324 = vmatpush1.msra.mxu0 0.0
  %325 = vmatprep.subr.mxu0 0.0
  %326 = vmatpush1.msra.mxu0 0.0
  %327 = vmatprep.subr.mxu0 0.0
  %328 = vmatpush1.msra.mxu0 0.0
  %329 = vmatprep.subr.mxu0 0.0
  %330 = vmatpush1.msra.mxu0 0.0
  %331 = vmatprep.subr.mxu0 0.0
  %332 = vmatpush1.msra.mxu0 0.0
  %333 = vmatprep.subr.mxu0 0.0
  %334 = vmatpush1.msra.mxu0 0.0
  %335 = vmatprep.subr.mxu0 0.0
  %336 = vmatpush1.msra.mxu0 0.0
  %337 = vmatprep.subr.mxu0 0.0
  %338 = vmatpush1.msra.mxu0 0.0
  %339 = vmatprep.subr.mxu0 0.0
  %340 = vmatpush1.msra.mxu0 0.0
  %341 = vmatprep.subr.mxu0 0.0
  %342 = vmatpush1.msra.mxu0 0.0
  %343 = vmatprep.subr.mxu0 0.0
  %344 = vmatpush1.msra.mxu0 0.0
  %345 = vmatprep.subr.mxu0 0.0
  %346 = vmatpush1.msra.mxu0 0.0
  %347 = vmatprep.mubr.f32.mxu0 0.0
  %348 = vmatmul.mubr.f32.gmra.mrb[0].mxu0 %v88
  %v349 = vpop.f32.mrb[0].mxu0
  %v350 = vadd.f32 %v84, %v349
  %v351 = vpop.f32.mrb[0].mxu0
  %352 = vmatprep.mubr.f32.mxu0 0.0
  %353 = vmatmul.mubr.f32.gmra.mrb[0].mxu0 %v91
  %v354 = vpop.f32.mrb[0].mxu0
  %v355 = vadd.f32 %v84, %v354
  %v356 = vpop.f32.mrb[0].mxu0
  %357 = vmatprep.mubr.f32.mxu0 0.0
  %358 = vmatmul.mubr.f32.gmra.mrb[0].mxu0 %v94
  %v359 = vpop.f32.mrb[0].mxu0
  %v360 = vadd.f32 %v84, %v359
  %v361 = vpop.f32.mrb[0].mxu0
  %362 = vmatprep.mubr.f32.mxu0 0.0
  %363 = vmatmul.mubr.f32.gmra.mrb[0].mxu0 %v97
  %v364 = vpop.f32.mrb[0].mxu0
  %v365 = vadd.f32 %v84, %v364
  %v366 = vpop.f32.mrb[0].mxu0
  %367 = vmatprep.mubr.f32.mxu0 0.0
  %368 = vmatmul.mubr.f32.gmra.mrb[0].mxu0 %v100
  %v369 = vpop.f32.mrb[0].mxu0
  %v370 = vadd.f32 %v84, %v369
  %v371 = vpop.f32.mrb[0].mxu0
  %372 = vmatprep.mubr.f32.mxu0 0.0
  %373 = vmatmul.mubr.f32.gmra.mrb[0].mxu0 %v103
  %v374 = vpop.f32.mrb[0].mxu0
  %v375 = vadd.f32 %v84, %v374
  %v376 = vpop.f32.mrb[0].mxu0
  %377 = vmatprep.mubr.f32.mxu0 0.0
  %378 = vmatmul.mubr.f32.gmra.mrb[0].mxu0 %v106
  %v379 = vpop.f32.mrb[0].mxu0
  %v380 = vadd.f32 %v84, %v379
  %v381 = vpop.f32.mrb[0].mxu0
  %382 = vmatprep.mubr.f32.mxu0 0.0
  %383 = vmatmul.mubr.f32.gmra.mrb[0].mxu0 %v109
  %v384 = vpop.f32.mrb[0].mxu0
  %v385 = vadd.f32 %v84, %v384
  %v386 = vpop.f32.mrb[0].mxu0
  %387 = vmatprep.mubr.f32.mxu0 0.0
  %388 = vmatmul.mubr.f32.gmra.mrb[0].mxu0 %v112
  %v389 = vpop.f32.mrb[0].mxu0
  %v390 = vadd.f32 %v84, %v389
  %v391 = vpop.f32.mrb[0].mxu0
  %392 = vmatprep.mubr.f32.mxu0 0.0
  %393 = vmatmul.mubr.f32.gmra.mrb[0].mxu0 %v115
  %v394 = vpop.f32.mrb[0].mxu0
  %v395 = vadd.f32 %v84, %v394
  %v396 = vpop.f32.mrb[0].mxu0
  %397 = vmatprep.mubr.f32.mxu0 0.0
  %398 = vmatmul.mubr.f32.gmra.mrb[0].mxu0 %v118
  %v399 = vpop.f32.mrb[0].mxu0
  %v400 = vadd.f32 %v84, %v399
  %v401 = vpop.f32.mrb[0].mxu0
  %402 = vmatprep.mubr.f32.mxu0 0.0
  %403 = vmatmul.mubr.f32.gmra.mrb[0].mxu0 %v121
  %v404 = vpop.f32.mrb[0].mxu0
  %v405 = vadd.f32 %v84, %v404
  %v406 = vpop.f32.mrb[0].mxu0
  %407 = vmatprep.mubr.f32.mxu0 0.0
  %408 = vmatmul.mubr.f32.gmra.mrb[0].mxu0 %v124
  %v409 = vpop.f32.mrb[0].mxu0
  %v410 = vadd.f32 %v84, %v409
  %v411 = vpop.f32.mrb[0].mxu0
  %412 = vmatprep.mubr.f32.mxu0 0.0
  %413 = vmatmul.mubr.f32.gmra.mrb[0].mxu0 %v127
  %v414 = vpop.f32.mrb[0].mxu0
  %v415 = vadd.f32 %v84, %v414
  %v416 = vpop.f32.mrb[0].mxu0
  %417 = vmatprep.mubr.f32.mxu0 0.0
  %418 = vmatmul.mubr.f32.gmra.mrb[0].mxu0 %v130
  %v419 = vpop.f32.mrb[0].mxu0
  %v420 = vadd.f32 %v84, %v419
  %v421 = vpop.f32.mrb[0].mxu0
  %422 = vmatprep.mubr.f32.mxu0 0.0
  %423 = vmatmul.mubr.f32.gmra.mrb[0].mxu0 %v133
  %v424 = vpop.f32.mrb[0].mxu0
  %v425 = vadd.f32 %v84, %v424
  %v426 = vpop.f32.mrb[0].mxu0
  %427 = vmatprep.mubr.f32.mxu0 0.0
  %428 = vmatmul.mubr.f32.gmra.mrb[0].mxu0 %v136
  %v429 = vpop.f32.mrb[0].mxu0
  %v430 = vadd.f32 %v84, %v429
  %v431 = vpop.f32.mrb[0].mxu0
  %432 = vmatprep.mubr.f32.mxu0 0.0
  %433 = vmatmul.mubr.f32.gmra.mrb[0].mxu0 %v139
  %v434 = vpop.f32.mrb[0].mxu0
  %v435 = vadd.f32 %v84, %v434
  %v436 = vpop.f32.mrb[0].mxu0
  %437 = vmatprep.mubr.f32.mxu0 0.0
  %438 = vmatmul.mubr.f32.gmra.mrb[0].mxu0 %v142
  %v439 = vpop.f32.mrb[0].mxu0
  %v440 = vadd.f32 %v84, %v439
  %v441 = vpop.f32.mrb[0].mxu0
  %442 = vmatprep.mubr.f32.mxu0 0.0
  %443 = vmatmul.mubr.f32.gmra.mrb[0].mxu0 %v145
  %v444 = vpop.f32.mrb[0].mxu0
  %v445 = vadd.f32 %v84, %v444
  %v446 = vpop.f32.mrb[0].mxu0
  %447 = vmatprep.mubr.f32.mxu0 0.0
  %448 = vmatmul.mubr.f32.gmra.mrb[0].mxu0 %v148
  %v449 = vpop.f32.mrb[0].mxu0
  %v450 = vadd.f32 %v84, %v449
  %v451 = vpop.f32.mrb[0].mxu0
  %452 = vmatprep.mubr.f32.mxu0 0.0
  %453 = vmatmul.mubr.f32.gmra.mrb[0].mxu0 %v151
  %v454 = vpop.f32.mrb[0].mxu0
  %v455 = vadd.f32 %v84, %v454
  %v456 = vpop.f32.mrb[0].mxu0
  %457 = vmatprep.mubr.f32.mxu0 0.0
  %458 = vmatmul.mubr.f32.gmra.mrb[0].mxu0 %v154
  %v459 = vpop.f32.mrb[0].mxu0
  %v460 = vadd.f32 %v84, %v459
  %v461 = vpop.f32.mrb[0].mxu0
  %462 = vmatprep.mubr.f32.mxu0 0.0
  %463 = vmatmul.mubr.f32.gmra.mrb[0].mxu0 %v157
  %v464 = vpop.f32.mrb[0].mxu0
  %v465 = vadd.f32 %v84, %v464
  %v466 = vpop.f32.mrb[0].mxu0
  %467 = vmatprep.mubr.f32.mxu0 0.0
  %468 = vmatmul.mubr.f32.gmra.mrb[0].mxu0 %v160
  %v469 = vpop.f32.mrb[0].mxu0
  %v470 = vadd.f32 %v84, %v469
  %v471 = vpop.f32.mrb[0].mxu0
  %472 = vmatprep.mubr.f32.mxu0 0.0
  %473 = vmatmul.mubr.f32.gmra.mrb[0].mxu0 %v163
  %v474 = vpop.f32.mrb[0].mxu0
  %v475 = vadd.f32 %v84, %v474
  %v476 = vpop.f32.mrb[0].mxu0
  %477 = vmatprep.mubr.f32.mxu0 0.0
  %478 = vmatmul.mubr.f32.gmra.mrb[0].mxu0 %v166
  %v479 = vpop.f32.mrb[0].mxu0
  %v480 = vadd.f32 %v84, %v479
  %v481 = vpop.f32.mrb[0].mxu0
  %482 = vmatprep.mubr.f32.mxu0 0.0
  %483 = vmatmul.mubr.f32.gmra.mrb[0].mxu0 %v169
  %v484 = vpop.f32.mrb[0].mxu0
  %v485 = vadd.f32 %v84, %v484
  %v486 = vpop.f32.mrb[0].mxu0
  %487 = vmatprep.mubr.f32.mxu0 0.0
  %488 = vmatmul.mubr.f32.gmra.mrb[0].mxu0 %v172
  %v489 = vpop.f32.mrb[0].mxu0
  %v490 = vadd.f32 %v84, %v489
  %v491 = vpop.f32.mrb[0].mxu0
  %492 = vmatprep.mubr.f32.mxu0 0.0
  %493 = vmatmul.mubr.f32.gmra.mrb[0].mxu0 %v175
  %v494 = vpop.f32.mrb[0].mxu0
  %v495 = vadd.f32 %v84, %v494
  %v496 = vpop.f32.mrb[0].mxu0
  %497 = vmatprep.mubr.f32.mxu0 0.0
  %498 = vmatmul.mubr.f32.gmra.mrb[0].mxu0 %v178
  %v499 = vpop.f32.mrb[0].mxu0
  %v500 = vadd.f32 %v84, %v499
  %v501 = vpop.f32.mrb[0].mxu0
  %502 = vmatprep.mubr.f32.mxu0 0.0
  %503 = vmatmul.mubr.f32.gmra.mrb[0].mxu0 %v181
  %v504 = vpop.f32.mrb[0].mxu0
  %v505 = vadd.f32 %v84, %v504
  %v506 = vpop.f32.mrb[0].mxu0
  %507 = vmatprep.mubr.f32.mxu0 0.0
  %508 = vmatmul.mubr.f32.gmra.mrb[0].mxu0 %v184
  %v509 = vpop.f32.mrb[0].mxu0
  %v510 = vadd.f32 %v84, %v509
  %v511 = vpop.f32.mrb[0].mxu0
  %512 = vmatprep.mubr.f32.mxu0 0.0
  %513 = vmatmul.mubr.f32.gmra.mrb[0].mxu0 %v187
  %v514 = vpop.f32.mrb[0].mxu0
  %v515 = vadd.f32 %v84, %v514
  %v516 = vpop.f32.mrb[0].mxu0
  %517 = vmatprep.mubr.f32.mxu0 0.0
  %518 = vmatmul.mubr.f32.gmra.mrb[0].mxu0 %v190
  %v519 = vpop.f32.mrb[0].mxu0
  %v520 = vadd.f32 %v84, %v519
  %v521 = vpop.f32.mrb[0].mxu0
  %522 = vmatprep.mubr.f32.mxu0 0.0
  %523 = vmatmul.mubr.f32.gmra.mrb[0].mxu0 %v193
  %v524 = vpop.f32.mrb[0].mxu0
  %v525 = vadd.f32 %v84, %v524
  %v526 = vpop.f32.mrb[0].mxu0
  %527 = vmatprep.mubr.f32.mxu0 0.0
  %528 = vmatmul.mubr.f32.gmra.mrb[0].mxu0 %v196
  %v529 = vpop.f32.mrb[0].mxu0
  %v530 = vadd.f32 %v84, %v529
  %v531 = vpop.f32.mrb[0].mxu0
  %532 = vmatprep.mubr.f32.mxu0 0.0
  %533 = vmatmul.mubr.f32.gmra.mrb[0].mxu0 %v199
  %v534 = vpop.f32.mrb[0].mxu0
  %v535 = vadd.f32 %v84, %v534
  %v536 = vpop.f32.mrb[0].mxu0
  %537 = vmatprep.mubr.f32.mxu0 0.0
  %538 = vmatmul.mubr.f32.gmra.mrb[0].mxu0 %v202
  %v539 = vpop.f32.mrb[0].mxu0
  %v540 = vadd.f32 %v84, %v539
  %v541 = vpop.f32.mrb[0].mxu0
  %542 = vmatprep.mubr.f32.mxu0 0.0
  %543 = vmatmul.mubr.f32.gmra.mrb[0].mxu0 %v205
  %v544 = vpop.f32.mrb[0].mxu0
  %v545 = vadd.f32 %v84, %v544
  %v546 = vpop.f32.mrb[0].mxu0
  %547 = vmatprep.mubr.f32.mxu0 0.0
  %548 = vmatmul.mubr.f32.gmra.mrb[0].mxu0 %v208
  %v549 = vpop.f32.mrb[0].mxu0
  %v550 = vadd.f32 %v84, %v549
  %v551 = vpop.f32.mrb[0].mxu0
  %552 = vmatprep.mubr.f32.mxu0 0.0
  %553 = vmatmul.mubr.f32.gmra.mrb[0].mxu0 %v211
  %v554 = vpop.f32.mrb[0].mxu0
  %v555 = vadd.f32 %v84, %v554
  %v556 = vpop.f32.mrb[0].mxu0
  %557 = vmatprep.mubr.f32.mxu0 0.0
  %558 = vmatmul.mubr.f32.gmra.mrb[0].mxu0 %v214
  %v559 = vpop.f32.mrb[0].mxu0
  %v560 = vadd.f32 %v84, %v559
  %v561 = vpop.f32.mrb[0].mxu0
  %562 = vmatprep.mubr.f32.mxu0 0.0
  %563 = vmatmul.mubr.f32.gmra.mrb[0].mxu0 %v217
  %v564 = vpop.f32.mrb[0].mxu0
  %v565 = vadd.f32 %v84, %v564
  %v566 = vpop.f32.mrb[0].mxu0
  %567 = vmatprep.mubr.f32.mxu0 0.0
  %568 = vmatmul.mubr.f32.gmra.mrb[0].mxu0 %v220
  %v569 = vpop.f32.mrb[0].mxu0
  %v570 = vadd.f32 %v84, %v569
  %v571 = vpop.f32.mrb[0].mxu0
  %572 = vmatprep.mubr.f32.mxu0 0.0
  %573 = vmatmul.mubr.f32.gmra.mrb[0].mxu0 %v223
  %v574 = vpop.f32.mrb[0].mxu0
  %v575 = vadd.f32 %v84, %v574
  %v576 = vpop.f32.mrb[0].mxu0
  %577 = vmatprep.mubr.f32.mxu0 0.0
  %578 = vmatmul.mubr.f32.gmra.mrb[0].mxu0 %v226
  %v579 = vpop.f32.mrb[0].mxu0
  %v580 = vadd.f32 %v84, %v579
  %v581 = vpop.f32.mrb[0].mxu0
  %582 = vmatprep.mubr.f32.mxu0 0.0
  %583 = vmatmul.mubr.f32.gmra.mrb[0].mxu0 %v229
  %v584 = vpop.f32.mrb[0].mxu0
  %v585 = vadd.f32 %v84, %v584
  %v586 = vpop.f32.mrb[0].mxu0
  %587 = vmatprep.mubr.f32.mxu0 0.0
  %588 = vmatmul.mubr.f32.gmra.mrb[0].mxu0 %v232
  %v589 = vpop.f32.mrb[0].mxu0
  %v590 = vadd.f32 %v84, %v589
  %v591 = vpop.f32.mrb[0].mxu0
  %592 = vmatprep.mubr.f32.mxu0 0.0
  %593 = vmatmul.mubr.f32.gmra.mrb[0].mxu0 %v235
  %v594 = vpop.f32.mrb[0].mxu0
  %v595 = vadd.f32 %v84, %v594
  %v596 = vpop.f32.mrb[0].mxu0
  %597 = vmatprep.mubr.f32.mxu0 0.0
  %598 = vmatmul.mubr.f32.gmra.mrb[0].mxu0 %v238
  %v599 = vpop.f32.mrb[0].mxu0
  %v600 = vadd.f32 %v84, %v599
  %v601 = vpop.f32.mrb[0].mxu0
  %602 = vmatprep.mubr.f32.mxu0 0.0
  %603 = vmatmul.mubr.f32.gmra.mrb[0].mxu0 %v241
  %v604 = vpop.f32.mrb[0].mxu0
  %v605 = vadd.f32 %v84, %v604
  %v606 = vpop.f32.mrb[0].mxu0
  %607 = vmatprep.mubr.f32.mxu0 0.0
  %608 = vmatmul.mubr.f32.gmra.mrb[0].mxu0 %v244
  %v609 = vpop.f32.mrb[0].mxu0
  %v610 = vadd.f32 %v84, %v609
  %v611 = vpop.f32.mrb[0].mxu0
  %612 = vmatprep.mubr.f32.mxu0 0.0
  %613 = vmatmul.mubr.f32.gmra.mrb[0].mxu0 %v247
  %v614 = vpop.f32.mrb[0].mxu0
  %v615 = vadd.f32 %v84, %v614
  %v616 = vpop.f32.mrb[0].mxu0
  %617 = vmatprep.mubr.f32.mxu0 0.0
  %618 = vmatmul.mubr.f32.gmra.mrb[0].mxu0 %v250
  %v619 = vpop.f32.mrb[0].mxu0
  %v620 = vadd.f32 %v84, %v619
  %v621 = vpop.f32.mrb[0].mxu0
  %622 = vmatprep.mubr.f32.mxu0 0.0
  %623 = vmatmul.mubr.f32.gmra.mrb[0].mxu0 %v253
  %v624 = vpop.f32.mrb[0].mxu0
  %v625 = vadd.f32 %v84, %v624
  %v626 = vpop.f32.mrb[0].mxu0
  %627 = vmatprep.mubr.f32.mxu0 0.0
  %628 = vmatmul.mubr.f32.gmra.mrb[0].mxu0 %v256
  %v629 = vpop.f32.mrb[0].mxu0
  %v630 = vadd.f32 %v84, %v629
  %v631 = vpop.f32.mrb[0].mxu0
  %632 = vmatprep.mubr.f32.mxu0 0.0
  %633 = vmatmul.mubr.f32.gmra.mrb[0].mxu0 %v259
  %v634 = vpop.f32.mrb[0].mxu0
  %v635 = vadd.f32 %v84, %v634
  %v636 = vpop.f32.mrb[0].mxu0
  %637 = vmatprep.mubr.f32.mxu0 0.0
  %638 = vmatmul.mubr.f32.gmra.mrb[0].mxu0 %v262
  %v639 = vpop.f32.mrb[0].mxu0
  %v640 = vadd.f32 %v84, %v639
  %v641 = vpop.f32.mrb[0].mxu0
  %642 = vmatprep.mubr.f32.mxu0 0.0
  %643 = vmatmul.mubr.f32.gmra.mrb[0].mxu0 %v265
  %v644 = vpop.f32.mrb[0].mxu0
  %v645 = vadd.f32 %v84, %v644
  %v646 = vpop.f32.mrb[0].mxu0
  %647 = vmatprep.mubr.f32.mxu0 0.0
  %648 = vmatmul.mubr.f32.gmra.mrb[0].mxu0 %v268
  %v649 = vpop.f32.mrb[0].mxu0
  %v650 = vadd.f32 %v84, %v649
  %v651 = vpop.f32.mrb[0].mxu0
  %652 = vmatprep.mubr.f32.mxu0 0.0
  %653 = vmatmul.mubr.f32.gmra.mrb[0].mxu0 %v271
  %v654 = vpop.f32.mrb[0].mxu0
  %v655 = vadd.f32 %v84, %v654
  %v656 = vpop.f32.mrb[0].mxu0
  %657 = vmatprep.mubr.f32.mxu0 0.0
  %658 = vmatmul.mubr.f32.gmra.mrb[0].mxu0 %v274
  %v659 = vpop.f32.mrb[0].mxu0
  %v660 = vadd.f32 %v84, %v659
  %v661 = vpop.f32.mrb[0].mxu0
  %662 = vmatprep.mubr.f32.mxu0 0.0
  %663 = vmatmul.mubr.f32.gmra.mrb[0].mxu0 %v277
  %v664 = vpop.f32.mrb[0].mxu0
  %v665 = vadd.f32 %v84, %v664
  %v666 = vpop.f32.mrb[0].mxu0
  %667 = vdwg.mxu0
  %v668 = vmax.f32 %v350, 0.0
  %v669 = vmax.f32 %v355, 0.0
  %v670 = vmax.f32 %v360, 0.0
  %v671 = vmax.f32 %v365, 0.0
  %v672 = vmax.f32 %v370, 0.0
  %v673 = vmax.f32 %v375, 0.0
  %v674 = vmax.f32 %v380, 0.0
  %v675 = vmax.f32 %v385, 0.0
  %v676 = vmax.f32 %v390, 0.0
  %v677 = vmax.f32 %v395, 0.0
  %v678 = vmax.f32 %v400, 0.0
  %v679 = vmax.f32 %v405, 0.0
  %v680 = vmax.f32 %v410, 0.0
  %v681 = vmax.f32 %v415, 0.0
  %v682 = vmax.f32 %v420, 0.0
  %v683 = vmax.f32 %v425, 0.0
  %v684 = vmax.f32 %v430, 0.0
  %v685 = vmax.f32 %v435, 0.0
  %v686 = vmax.f32 %v440, 0.0
  %v687 = vmax.f32 %v445, 0.0
  %v688 = vmax.f32 %v450, 0.0
  %v689 = vmax.f32 %v455, 0.0
  %v690 = vmax.f32 %v460, 0.0
  %v691 = vmax.f32 %v465, 0.0
  %v692 = vmax.f32 %v470, 0.0
  %v693 = vmax.f32 %v475, 0.0
  %v694 = vmax.f32 %v480, 0.0
  %v695 = vmax.f32 %v485, 0.0
  %v696 = vmax.f32 %v490, 0.0
  %v697 = vmax.f32 %v495, 0.0
  %v698 = vmax.f32 %v500, 0.0
  %v699 = vmax.f32 %v505, 0.0
  %v700 = vmax.f32 %v510, 0.0
  %v701 = vmax.f32 %v515, 0.0
  %v702 = vmax.f32 %v520, 0.0
  %v703 = vmax.f32 %v525, 0.0
  %v704 = vmax.f32 %v530, 0.0
  %v705 = vmax.f32 %v535, 0.0
  %v706 = vmax.f32 %v540, 0.0
  %v707 = vmax.f32 %v545, 0.0
  %v708 = vmax.f32 %v550, 0.0
  %v709 = vmax.f32 %v555, 0.0
  %v710 = vmax.f32 %v560, 0.0
  %v711 = vmax.f32 %v565, 0.0
  %v712 = vmax.f32 %v570, 0.0
  %v713 = vmax.f32 %v575, 0.0
  %v714 = vmax.f32 %v580, 0.0
  %v715 = vmax.f32 %v585, 0.0
  %v716 = vmax.f32 %v590, 0.0
  %v717 = vmax.f32 %v595, 0.0
  %v718 = vmax.f32 %v600, 0.0
  %v719 = vmax.f32 %v605, 0.0
  %v720 = vmax.f32 %v610, 0.0
  %v721 = vmax.f32 %v615, 0.0
  %v722 = vmax.f32 %v620, 0.0
  %v723 = vmax.f32 %v625, 0.0
  %v724 = vmax.f32 %v630, 0.0
  %v725 = vmax.f32 %v635, 0.0
  %v726 = vmax.f32 %v640, 0.0
  %v727 = vmax.f32 %v645, 0.0
  %v728 = vmax.f32 %v650, 0.0
  %v729 = vmax.f32 %v655, 0.0
  %v730 = vmax.f32 %v660, 0.0
  %v731 = vmax.f32 %v665, 0.0
  %vm732 = vcmask 130048
  %733 = vst.msk [vmem:[%s3] sm:$0xff] %vm732, %v668
  %734 = vst.msk [vmem:[%s3 + $0x8] sm:$0xff] %vm732, %v669
  %735 = vst.msk [vmem:[%s3 + $0x10] sm:$0xff] %vm732, %v670
  %736 = vst.msk [vmem:[%s3 + $0x18] sm:$0xff] %vm732, %v671
  %737 = vst.msk [vmem:[%s3 + $0x20] sm:$0xff] %vm732, %v672
  %738 = vst.msk [vmem:[%s3 + $0x28] sm:$0xff] %vm732, %v673
  %739 = vst.msk [vmem:[%s3 + $0x30] sm:$0xff] %vm732, %v674
  %740 = vst.msk [vmem:[%s3 + $0x38] sm:$0xff] %vm732, %v675
  %741 = vst.msk [vmem:[%s3 + $0x40] sm:$0xff] %vm732, %v676
  %742 = vst.msk [vmem:[%s3 + $0x48] sm:$0xff] %vm732, %v677
  %743 = vst.msk [vmem:[%s3 + $0x50] sm:$0xff] %vm732, %v678
  %744 = vst.msk [vmem:[%s3 + $0x58] sm:$0xff] %vm732, %v679
  %745 = vst.msk [vmem:[%s3 + $0x60] sm:$0xff] %vm732, %v680
  %746 = vst.msk [vmem:[%s3 + $0x68] sm:$0xff] %vm732, %v681
  %747 = vst.msk [vmem:[%s3 + $0x70] sm:$0xff] %vm732, %v682
  %748 = vst.msk [vmem:[%s3 + $0x78] sm:$0xff] %vm732, %v683
  %749 = vst.msk [vmem:[%s3 + $0x80] sm:$0xff] %vm732, %v684
  %750 = vst.msk [vmem:[%s3 + $0x88] sm:$0xff] %vm732, %v685
  %751 = vst.msk [vmem:[%s3 + $0x90] sm:$0xff] %vm732, %v686
  %752 = vst.msk [vmem:[%s3 + $0x98] sm:$0xff] %vm732, %v687
  %753 = vst.msk [vmem:[%s3 + $0xa0] sm:$0xff] %vm732, %v688
  %754 = vst.msk [vmem:[%s3 + $0xa8] sm:$0xff] %vm732, %v689
  %755 = vst.msk [vmem:[%s3 + $0xb0] sm:$0xff] %vm732, %v690
  %756 = vst.msk [vmem:[%s3 + $0xb8] sm:$0xff] %vm732, %v691
  %757 = vst.msk [vmem:[%s3 + $0xc0] sm:$0xff] %vm732, %v692
  %758 = vst.msk [vmem:[%s3 + $0xc8] sm:$0xff] %vm732, %v693
  %759 = vst.msk [vmem:[%s3 + $0xd0] sm:$0xff] %vm732, %v694
  %760 = vst.msk [vmem:[%s3 + $0xd8] sm:$0xff] %vm732, %v695
  %761 = vst.msk [vmem:[%s3 + $0xe0] sm:$0xff] %vm732, %v696
  %762 = vst.msk [vmem:[%s3 + $0xe8] sm:$0xff] %vm732, %v697
  %763 = vst.msk [vmem:[%s3 + $0xf0] sm:$0xff] %vm732, %v698
  %764 = vst.msk [vmem:[%s3 + $0xf8] sm:$0xff] %vm732, %v699
  %765 = vst.msk [vmem:[%s3 + $0x100] sm:$0xff] %vm732, %v700
  %766 = vst.msk [vmem:[%s3 + $0x108] sm:$0xff] %vm732, %v701
  %767 = vst.msk [vmem:[%s3 + $0x110] sm:$0xff] %vm732, %v702
  %768 = vst.msk [vmem:[%s3 + $0x118] sm:$0xff] %vm732, %v703
  %769 = vst.msk [vmem:[%s3 + $0x120] sm:$0xff] %vm732, %v704
  %770 = vst.msk [vmem:[%s3 + $0x128] sm:$0xff] %vm732, %v705
  %771 = vst.msk [vmem:[%s3 + $0x130] sm:$0xff] %vm732, %v706
  %772 = vst.msk [vmem:[%s3 + $0x138] sm:$0xff] %vm732, %v707
  %773 = vst.msk [vmem:[%s3 + $0x140] sm:$0xff] %vm732, %v708
  %774 = vst.msk [vmem:[%s3 + $0x148] sm:$0xff] %vm732, %v709
  %775 = vst.msk [vmem:[%s3 + $0x150] sm:$0xff] %vm732, %v710
  %776 = vst.msk [vmem:[%s3 + $0x158] sm:$0xff] %vm732, %v711
  %777 = vst.msk [vmem:[%s3 + $0x160] sm:$0xff] %vm732, %v712
  %778 = vst.msk [vmem:[%s3 + $0x168] sm:$0xff] %vm732, %v713
  %779 = vst.msk [vmem:[%s3 + $0x170] sm:$0xff] %vm732, %v714
  %780 = vst.msk [vmem:[%s3 + $0x178] sm:$0xff] %vm732, %v715
  %781 = vst.msk [vmem:[%s3 + $0x180] sm:$0xff] %vm732, %v716
  %782 = vst.msk [vmem:[%s3 + $0x188] sm:$0xff] %vm732, %v717
  %783 = vst.msk [vmem:[%s3 + $0x190] sm:$0xff] %vm732, %v718
  %784 = vst.msk [vmem:[%s3 + $0x198] sm:$0xff] %vm732, %v719
  %785 = vst.msk [vmem:[%s3 + $0x1a0] sm:$0xff] %vm732, %v720
  %786 = vst.msk [vmem:[%s3 + $0x1a8] sm:$0xff] %vm732, %v721
  %787 = vst.msk [vmem:[%s3 + $0x1b0] sm:$0xff] %vm732, %v722
  %788 = vst.msk [vmem:[%s3 + $0x1b8] sm:$0xff] %vm732, %v723
  %789 = vst.msk [vmem:[%s3 + $0x1c0] sm:$0xff] %vm732, %v724
  %790 = vst.msk [vmem:[%s3 + $0x1c8] sm:$0xff] %vm732, %v725
  %791 = vst.msk [vmem:[%s3 + $0x1d0] sm:$0xff] %vm732, %v726
  %792 = vst.msk [vmem:[%s3 + $0x1d8] sm:$0xff] %vm732, %v727
  %793 = vst.msk [vmem:[%s3 + $0x1e0] sm:$0xff] %vm732, %v728
  %794 = vst.msk [vmem:[%s3 + $0x1e8] sm:$0xff] %vm732, %v729
  %795 = vst.msk [vmem:[%s3 + $0x1f0] sm:$0xff] %vm732, %v730
  %796 = vst.msk [vmem:[%s3 + $0x1f8] sm:$0xff] %vm732, %v731
  // Predicated region
  $region14: #{tpu_custom_call.1} parent=0 // pred_check
    _
  $region15: #{tpu_custom_call.1} parent=0 // pred_check_branch
    %798 = sbr.rel (0) target = $region17
  $region16: #{tpu_custom_call.1} parent=0 // pred_region
    _
  $region17: #{tpu_custom_call.1} parent=0 // pred_fallthru
    _
  // Predicated region
  $region18: #{tpu_custom_call.1} parent=0 // pred_check
    _
  $region19: #{tpu_custom_call.1} parent=0 // pred_check_branch
    %800 = sbr.rel (0) target = $region21
  $region20: #{tpu_custom_call.1} parent=0 // pred_region
    _
  $region21: #{tpu_custom_call.1} parent=0 // pred_fallthru
    _

</llo_original>
